<compile_context>
chip_gen: v7x
topology: tpu7x:2x2x1
jax: 0.10.0
libtpu: 0.0.40
codegen_flags: <defaults>
</compile_context>

<pallas_src>
import math

import jax
import jax.numpy as jnp
from jax.experimental import pallas as pl
from jax.experimental.pallas import tpu as pltpu


_MAX_LANE = 32768          # widest lane-dense slab we will look for
_MAX_DMA_CHUNKS = 4        # outstanding HBM->HBM DMAs
_MIN_CHUNK_BYTES = 1 << 20  # don't split buffers smaller than ~1 MiB/chunk


def _pick_lane(total: int, sublane_mult: int):
    """Largest multiple-of-128 divisor of `total` (<= _MAX_LANE), preferring one
    that leaves at least `sublane_mult` rows.  None if no divisor exists."""
    best_any = None
    for lane in range(_MAX_LANE, 127, -128):
        if total % lane == 0:
            if best_any is None:
                best_any = lane
            if total // lane >= sublane_mult:
                return lane
    return best_any


def _make_dma_copy_kernel(chunks):
    """Kernel copying disjoint row-chunks HBM->HBM with overlapping DMAs."""

    def kernel(x_hbm, o_hbm, sems):
        copies = []
        for i, (start, size) in enumerate(chunks):
            cp = pltpu.make_async_copy(
                x_hbm.at[pl.ds(start, size), :],
                o_hbm.at[pl.ds(start, size), :],
                sems.at[i],
            )
            cp.start()
            copies.append(cp)
        for cp in copies:
            cp.wait()

    return kernel


def _flatten_impl(x: jax.Array) -> jax.Array:
    b = x.shape[0]
    n = math.prod(x.shape[1:]) if x.ndim > 1 else 1
    total = b * n
    itemsize = jnp.dtype(x.dtype).itemsize

    if total == 0:
        # Degenerate empty tensor: reshape is enough, nothing to copy.
        return jnp.reshape(x, (b, n))

    # dtype-aware sublane multiple (8 for f32, 16 for bf16, 32 for int8/fp8).
    sublane_mult = 8 * max(1, 4 // itemsize)

    # Lane-dense re-view of the whole buffer (row-major, order preserving).
    lane = _pick_lane(total, sublane_mult)
    if lane is not None:
        rows = total // lane
    else:
        rows, lane = b, n  # ragged: DMA path handles arbitrary last dims.

    x_slab = jnp.reshape(x, (rows, lane))

    # Split rows into up to _MAX_DMA_CHUNKS roughly equal contiguous chunks.
    total_bytes = total * itemsize
    n_chunks = max(1, min(_MAX_DMA_CHUNKS, rows, total_bytes // _MIN_CHUNK_BYTES))
    base, rem = divmod(rows, n_chunks)
    chunks = []
    start = 0
    for i in range(n_chunks):
        size = base + (1 if i < rem else 0)
        chunks.append((start, size))
        start += size

    out_slab = pl.pallas_call(
        _make_dma_copy_kernel(chunks),
        out_shape=jax.ShapeDtypeStruct((rows, lane), x.dtype),
        in_specs=[pl.BlockSpec(memory_space=pl.ANY)],
        out_specs=pl.BlockSpec(memory_space=pl.ANY),
        scratch_shapes=[pltpu.SemaphoreType.DMA((n_chunks,))],
        cost_estimate=pl.CostEstimate(
            flops=0,
            transcendentals=0,
            bytes_accessed=2 * total_bytes,
        ),
    )(x_slab)

    return jnp.reshape(out_slab, (b, n))


flatten = jax.jit(_flatten_impl)


if __name__ == "__main__":
    key = jax.random.PRNGKey(0)
    # Small NCHW input consistent with a conv-style feature map.
    B, C, H, W = 2, 4, 16, 16
    x = jax.random.normal(key, (B, C, H, W), dtype=jnp.float32)

    # Reference: PyTorch x.view(B, -1) == row-major reshape.
    ref = jnp.reshape(x, (B, C * H * W))

    out = flatten(x)
    out = jax.block_until_ready(out)

    assert out.shape == (B, C * H * W), out.shape
    assert out.dtype == x.dtype, out.dtype
    assert jnp.array_equal(out, ref), "flatten kernel mismatch"

    print("KERNEL_OK")
</pallas_src>

<mosaic_0001>
module attributes {stable_mosaic.version = 11 : i64} {
  func.func @kernel(%arg0: memref<8x256xf32, #tpu.memory_space<any>>, %arg1: memref<8x256xf32, #tpu.memory_space<any>>, %arg2: memref<1x!tpu.dma_semaphore, #tpu.memory_space<semaphore_mem>>) attributes {dimension_semantics = [], scalar_prefetch = 0 : i64, scratch_operands = 1 : i64, tpu.core_type = #tpu.core_type<tc>} {
    %c0_i32 = arith.constant 0 : i32
    %c0_i32_0 = arith.constant 0 : i32
    %c0_i32_1 = arith.constant 0 : i32
    %0 = tpu.memref_slice %arg0[%c0_i32_0, %c0_i32_1] : memref<8x256xf32, #tpu.memory_space<any>> -> memref<8x256xf32, #tpu.memory_space<any>>
    %c0_i32_2 = arith.constant 0 : i32
    %c0_i32_3 = arith.constant 0 : i32
    %1 = tpu.memref_slice %arg1[%c0_i32_2, %c0_i32_3] : memref<8x256xf32, #tpu.memory_space<any>> -> memref<8x256xf32, #tpu.memory_space<any>>
    %2 = tpu.memref_slice %arg2[%c0_i32] : memref<1x!tpu.dma_semaphore, #tpu.memory_space<semaphore_mem>> -> memref<1x!tpu.dma_semaphore, #tpu.memory_space<semaphore_mem>>
    %3 = tpu.memref_squeeze %2 : memref<1x!tpu.dma_semaphore, #tpu.memory_space<semaphore_mem>> -> memref<!tpu.dma_semaphore, #tpu.memory_space<semaphore_mem>>
    tpu.enqueue_dma source(%0 : memref<8x256xf32, #tpu.memory_space<any>>) target(%1 : memref<8x256xf32, #tpu.memory_space<any>>) target_semaphore(%3 : memref<!tpu.dma_semaphore, #tpu.memory_space<semaphore_mem>>)
    %c0_i32_4 = arith.constant 0 : i32
    %c0_i32_5 = arith.constant 0 : i32
    %c0_i32_6 = arith.constant 0 : i32
    %4 = tpu.memref_slice %arg0[%c0_i32_5, %c0_i32_6] : memref<8x256xf32, #tpu.memory_space<any>> -> memref<8x256xf32, #tpu.memory_space<any>>
    %c0_i32_7 = arith.constant 0 : i32
    %c0_i32_8 = arith.constant 0 : i32
    %5 = tpu.memref_slice %arg1[%c0_i32_7, %c0_i32_8] : memref<8x256xf32, #tpu.memory_space<any>> -> memref<8x256xf32, #tpu.memory_space<any>>
    %6 = tpu.memref_slice %arg2[%c0_i32_4] : memref<1x!tpu.dma_semaphore, #tpu.memory_space<semaphore_mem>> -> memref<1x!tpu.dma_semaphore, #tpu.memory_space<semaphore_mem>>
    %7 = tpu.memref_squeeze %6 : memref<1x!tpu.dma_semaphore, #tpu.memory_space<semaphore_mem>> -> memref<!tpu.dma_semaphore, #tpu.memory_space<semaphore_mem>>
    tpu.wait_dma2 semaphore(%7 : memref<!tpu.dma_semaphore, #tpu.memory_space<semaphore_mem>>) src(%4 : memref<8x256xf32, #tpu.memory_space<any>>) dst(%5 : memref<8x256xf32, #tpu.memory_space<any>>)
    return
  }
}

</mosaic_0001>

<llo_original>
// kernel: _flatten_impl.1
$region0: #{_flatten_impl.1}
  #allocation0 [shape = 'u32[]', space=smem, size = 0x4, offset = 0x4, fixed_abs, tag = 'smem constant byte address 0x4 - core index']
  #allocation1 [shape = 'u32[144,128]{1,0:T(1,128)}', space=vmem, size = 0x12000, scoped, tag = 'internal scratch']
  #allocation2 [shape = 's32[1]{0}', space=sflag, size = 0x4, scoped, tag = 'scratch operand']
  #allocation3 [shape = 's32[]', space=sflag, size = 0x4, offset = 0, fixed_abs, tag = 'sflag constant byte address 0x0 - dummy sync flag']
  %s0 = inlined_call_operand.vmem [shape: f32[8,256], index: 0, kind: input, shape index: {}]
  %s1 = inlined_call_operand.vmem [shape: f32[8,256], index: 1, kind: output, shape index: {}]
  %s2 = sld [smem:[#allocation0]]
  $region36: #{_flatten_impl.1} parent=0
    _
  %s4 = ssub.s32 1, %s2
  %s5 = scalar_select 0, %s4, %s2
  %p7 = scmp.lt.u32.totalorder 16, 8
  %p8 = pneg %p7
  // Predicated region
  $region2: #{_flatten_impl.1} parent=0 // pred_check
    _
  $region3: #{_flatten_impl.1} parent=0 // pred_check_branch
    %10 = sbr.rel (%p7) target = $region5
  $region4: #{_flatten_impl.1} parent=0 // pred_region
    %s25 = sand.u32 16, 7
    %p26 = scmp.eq.s32.totalorder %s25, 0
    // Predicated region
    $region17: #{_flatten_impl.1} parent=4 // pred_check
      %p27 = pneg %p26
    $region18: #{_flatten_impl.1} parent=4 // pred_check_branch
      %29 = sbr.rel (%p27) target = $region20
    $region19: #{_flatten_impl.1} parent=4 // pred_region
      loop: start=0, step=1, limit=1
      $region21: #{_flatten_impl.1} parent=19 // loop_pre_header
        _
      $region22: #{_flatten_impl.1} parent=19 // loop_header
        %s31 = sphi 0, %s35
        %p32 = scmp.ge.s32.totalorder %s31, 1
        %s36 = sphi %s0, %s0
        %s37 = sphi %s1, %s1
      $region23: #{_flatten_impl.1} parent=19 // loop_header_branch
        %34 = sbr.rel (%p32) target = $region27
      $region24: #{_flatten_impl.1} parent=19 // loop_body
        %v38 = vld [vmem:[%s36] sm:$0xff]
        %39 = vst [vmem:[%s37] sm:$0xff] %v38
        %v40 = vld [vmem:[%s36 + $0x8] sm:$0xff]
        %41 = vst [vmem:[%s37 + $0x8] sm:$0xff] %v40
      $region25: #{_flatten_impl.1} parent=19 // loop_footer
        %s35 = sadd.s32 1, %s31
      $region26: #{_flatten_impl.1} parent=19 // loop_footer_branch
        %30 = sbr.rel target = $region22
      $region27: #{_flatten_impl.1} parent=19 // loop_exit
        _
    $region20: #{_flatten_impl.1} parent=4 // pred_fallthru
      _
    %p42 = pneg %p26
    // Predicated region
    $region28: #{_flatten_impl.1} parent=4 // pred_check
      _
    $region29: #{_flatten_impl.1} parent=4 // pred_check_branch
      %44 = sbr.rel (%p26) target = $region31
    $region30: #{_flatten_impl.1} parent=4 // pred_region
      %s45 = sand.u32 16, 7
    $region31: #{_flatten_impl.1} parent=4 // pred_fallthru
      _
  $region5: #{_flatten_impl.1} parent=0 // pred_fallthru
    _
  // Predicated region
  $region6: #{_flatten_impl.1} parent=0 // pred_check
    %p11 = pneg %p7
  $region7: #{_flatten_impl.1} parent=0 // pred_check_branch
    %13 = sbr.rel (%p11) target = $region9
  $region8: #{_flatten_impl.1} parent=0 // pred_region
    %s14 = sshllo.u32 0, 16
    loop: start=0, step=1, limit=1
    $region10: #{_flatten_impl.1} parent=8 // loop_pre_header
      _
    $region11: #{_flatten_impl.1} parent=8 // loop_header
      %s16 = sphi 0, %s20
      %p17 = scmp.ge.s32.totalorder %s16, 1
      %s21 = sphi %s0, %s0
      %s22 = sphi %s1, %s1
    $region12: #{_flatten_impl.1} parent=8 // loop_header_branch
      %19 = sbr.rel (%p17) target = $region16
    $region13: #{_flatten_impl.1} parent=8 // loop_body
      %v23 = vld [vmem:[%s21] sm:%s14]
      %24 = vst [vmem:[%s22] sm:%s14] %v23
    $region14: #{_flatten_impl.1} parent=8 // loop_footer
      %s20 = sadd.s32 1, %s16
    $region15: #{_flatten_impl.1} parent=8 // loop_footer_branch
      %15 = sbr.rel target = $region11
    $region16: #{_flatten_impl.1} parent=8 // loop_exit
      _
  $region9: #{_flatten_impl.1} parent=0 // pred_fallthru
    _
  // Predicated region
  $region32: #{_flatten_impl.1} parent=0 // pred_check
    _
  $region33: #{_flatten_impl.1} parent=0 // pred_check_branch
    %48 = sbr.rel (0) target = $region35
  $region34: #{_flatten_impl.1} parent=0 // pred_region
    %49 = vsyncadd [#allocation2], 256
  $region35: #{_flatten_impl.1} parent=0 // pred_fallthru
    _
  %s50 = smul.u32 8, 1
  %s51 = smul.u32 %s50, 2
  %s52 = sshll.u32 %s51, 4
  %53 = dma.done [#allocation2], %s52
  %54 = vsyncmov [#allocation2]
  %s55 = vpop.sfrf %54
  %p56 = scmp.eq.s32.totalorder %s55, 0
  %p57 = pneg %p56
  %59 = shalt.err (%p57)

</llo_original>
